<compile_context>
chip_gen: v7x
topology: tpu7x:2x2x1
jax: 0.10.0
libtpu: 0.0.40
codegen_flags: <defaults>
</compile_context>

<pallas_src>
import jax
import jax.numpy as jnp
from jax import lax
from jax.experimental import pallas as pl
from jax.experimental.pallas import tpu as pltpu


def _round_up(n, m):
    return ((n + m - 1) // m) * m


def _choose_tile_b(batch, tile_b):
    """Pick a batch tile: full-dim single tile, or a multiple of 128 (lane-dense
    transposed output, sublane-aligned x) with >= 2 tiles when batch allows."""
    t = min(tile_b, _round_up(pl.cdiv(batch, 2), 128))  # encourage >= 2 tiles (v7x)
    if t >= batch:
        return batch, 1          # single tile, full-dim blocks (always legal)
    t = _round_up(t, 128)
    if t >= batch:
        return batch, 1
    return t, pl.cdiv(batch, t)


def _pgo_kernel(x_ref, w1_ref, b1_ref, w2_ref, b2_ref, w3t_ref, b3t_ref, mean_t_ref):
    mm_dtype = w1_ref.dtype
    # fc1 + relu (cast x in-kernel; MXU dot with f32 accumulation; bias/ReLU in f32)
    h1 = jnp.dot(x_ref[...].astype(mm_dtype), w1_ref[...],
                 preferred_element_type=jnp.float32)
    h1 = jnp.maximum(h1 + b1_ref[...], 0.0)
    # fc2 + relu
    h2 = jnp.dot(h1.astype(mm_dtype), w2_ref[...],
                 preferred_element_type=jnp.float32)
    h2 = jnp.maximum(h2 + b2_ref[...], 0.0)
    # Transposed head: (out, hidden) x (tile_b, hidden) contracted on hidden
    #   -> mean^T block of shape (out, tile_b): lane-dense stores.
    mt = lax.dot_general(w3t_ref[...], h2.astype(mm_dtype),
                         dimension_numbers=(((1,), (1,)), ((), ())),
                         preferred_element_type=jnp.float32)
    mean_t_ref[...] = (mt + b3t_ref[...]).astype(mean_t_ref.dtype)


def continuous_pgo_forward(x, params, *, tile_b=512, use_bf16=False):
    """x: (B, input_size) float32. Returns (mean: (B, out), std: (1, out))."""
    w1, b1 = params["w1"], params["b1"]
    w2, b2 = params["w2"], params["b2"]
    w3, b3 = params["w3"], params["b3"]
    log_std = params["log_std"]

    B, in_size = x.shape
    hidden = w1.shape[1]
    out_size = w3.shape[1]

    # Matmul dtype. Weights are tiny (~72 KiB) and resident -> cast once here;
    # x stays f32 in HBM and is cast inside the kernel (no materialized copy).
    mm_dtype = jnp.bfloat16 if use_bf16 else jnp.float32
    w1k, w2k = w1.astype(mm_dtype), w2.astype(mm_dtype)
    w3tk = jnp.transpose(w3).astype(mm_dtype)                  # (out, hidden)
    b1k, b2k = b1.astype(jnp.float32), b2.astype(jnp.float32)
    b3tk = jnp.reshape(b3, (out_size, 1)).astype(jnp.float32)  # (out, 1)

    tile, grid_b = _choose_tile_b(B, tile_b)

    weight_bytes = sum(int(a.size) * a.dtype.itemsize
                       for a in (w1k, b1k, w2k, b2k, w3tk, b3tk))
    cost = pl.CostEstimate(
        flops=2 * B * (in_size * hidden + hidden * hidden + hidden * out_size),
        transcendentals=0,
        bytes_accessed=(B * in_size * x.dtype.itemsize
                        + B * out_size * 4 + weight_bytes),
    )

    mean_t = pl.pallas_call(
        _pgo_kernel,
        out_shape=jax.ShapeDtypeStruct((out_size, B), jnp.float32),
        grid=(grid_b,),
        in_specs=[
            pl.BlockSpec((tile, in_size), lambda i: (i, 0)),     # x (pipelined)
            pl.BlockSpec((in_size, hidden), lambda i: (0, 0)),   # W1 (resident)
            pl.BlockSpec((1, hidden), lambda i: (0, 0)),         # b1
            pl.BlockSpec((hidden, hidden), lambda i: (0, 0)),    # W2
            pl.BlockSpec((1, hidden), lambda i: (0, 0)),         # b2
            pl.BlockSpec((out_size, hidden), lambda i: (0, 0)),  # W3^T
            pl.BlockSpec((out_size, 1), lambda i: (0, 0)),       # b3^T
        ],
        out_specs=pl.BlockSpec((out_size, tile), lambda i: (0, i)),  # mean^T
        compiler_params=pltpu.CompilerParams(
            dimension_semantics=("parallel",)),
        cost_estimate=cost,
    )(x, w1k, b1k, w2k, b2k, w3tk, b3tk)

    # Tiny layout-plumbing transpose (out_size * B * 4 bytes), not a full slab pass.
    mean = jnp.transpose(mean_t)
    # std is batch-independent: computed once in plain JAX (hoisted out of kernel).
    std = jnp.exp(log_std)
    return mean, std


def init_params(key, input_size, output_size, hidden=128):
    """Deterministic synthetic init (shapes match the torch module)."""
    ks = jax.random.split(key, 6)
    scale1 = 1.0 / jnp.sqrt(input_size)
    scale2 = 1.0 / jnp.sqrt(hidden)
    return {
        "w1": jax.random.uniform(ks[0], (input_size, hidden), jnp.float32,
                                 -scale1, scale1),
        "b1": jax.random.uniform(ks[1], (1, hidden), jnp.float32, -scale1, scale1),
        "w2": jax.random.uniform(ks[2], (hidden, hidden), jnp.float32,
                                 -scale2, scale2),
        "b2": jax.random.uniform(ks[3], (1, hidden), jnp.float32, -scale2, scale2),
        "w3": jax.random.uniform(ks[4], (hidden, output_size), jnp.float32,
                                 -scale2, scale2),
        "b3": jax.random.uniform(ks[5], (1, output_size), jnp.float32,
                                 -scale2, scale2),
        "log_std": jnp.zeros((1, output_size), jnp.float32),  # nn.Parameter(zeros)
    }


def reference_forward(x, p, *, use_bf16=False):
    """Pure-JAX reference mirroring the kernel's dtype choices."""
    mm = jnp.bfloat16 if use_bf16 else jnp.float32
    h1 = jnp.maximum(jnp.dot(x.astype(mm), p["w1"].astype(mm),
                             preferred_element_type=jnp.float32) + p["b1"], 0.0)
    h2 = jnp.maximum(jnp.dot(h1.astype(mm), p["w2"].astype(mm),
                             preferred_element_type=jnp.float32) + p["b2"], 0.0)
    mean = jnp.dot(h2.astype(mm), p["w3"].astype(mm),
                   preferred_element_type=jnp.float32) + p["b3"]
    std = jnp.exp(p["log_std"])
    return mean, std


if __name__ == "__main__":
    key = jax.random.PRNGKey(0)
    k_param, k_x1, k_x2 = jax.random.split(key, 3)

    input_size, output_size = 32, 8
    params = init_params(k_param, input_size, output_size)

    # Case 1: small batch -> single full-dim tile, f32 MXU path (torch-like numerics).
    x1 = jax.random.normal(k_x1, (8, input_size), jnp.float32)
    mean1, std1 = continuous_pgo_forward(x1, params)
    mean1 = jax.block_until_ready(mean1)
    std1 = jax.block_until_ready(std1)
    ref_mean1, ref_std1 = reference_forward(x1, params, use_bf16=False)
    assert mean1.shape == (8, output_size)
    assert std1.shape == (1, output_size)
    assert jnp.allclose(mean1, ref_mean1, atol=1e-3, rtol=1e-3)
    assert jnp.allclose(std1, ref_std1, atol=1e-6, rtol=1e-6)

    # Case 2: multi-tile grid with a partial (masked) final block, bf16 MXU path.
    #   B=200 -> tile=128 -> grid=(2,), second block covers rows 128..255 (200..255 masked).
    x2 = jax.random.normal(k_x2, (200, input_size), jnp.float32)
    mean2, std2 = continuous_pgo_forward(x2, params, use_bf16=True)
    mean2 = jax.block_until_ready(mean2)
    ref_mean2, ref_std2 = reference_forward(x2, params, use_bf16=True)
    assert mean2.shape == (200, output_size)
    assert jnp.allclose(mean2, ref_mean2, atol=1e-4, rtol=1e-4)
    assert jnp.allclose(std2, ref_std2, atol=1e-6, rtol=1e-6)

    print("KERNEL_OK")
</pallas_src>

<mosaic_0001>
module attributes {stable_mosaic.version = 11 : i64} {
  func.func @_pgo_kernel(%arg0: i32, %arg1: memref<8x32xf32, #tpu.memory_space<vmem>>, %arg2: memref<32x128xf32, #tpu.memory_space<vmem>>, %arg3: memref<1x128xf32, #tpu.memory_space<vmem>>, %arg4: memref<128x128xf32, #tpu.memory_space<vmem>>, %arg5: memref<1x128xf32, #tpu.memory_space<vmem>>, %arg6: memref<8x128xf32, #tpu.memory_space<vmem>>, %arg7: memref<8x1xf32, #tpu.memory_space<vmem>>, %arg8: memref<8x8xf32, #tpu.memory_space<vmem>>) attributes {dimension_semantics = [#tpu.dimension_semantics<parallel>], iteration_bounds = array<i64: 1>, scalar_prefetch = 0 : i64, scratch_operands = 0 : i64, tpu.core_type = #tpu.core_type<tc>, window_params = [{transform_indices = @transform_0, window_bounds = array<i64: 8, 32>}, {pipeline_mode = #tpu.pipeline_mode<synchronous>, transform_indices = @transform_1, window_bounds = array<i64: 32, 128>}, {pipeline_mode = #tpu.pipeline_mode<synchronous>, transform_indices = @transform_2, window_bounds = array<i64: 1, 128>}, {pipeline_mode = #tpu.pipeline_mode<synchronous>, transform_indices = @transform_3, window_bounds = array<i64: 128, 128>}, {pipeline_mode = #tpu.pipeline_mode<synchronous>, transform_indices = @transform_4, window_bounds = array<i64: 1, 128>}, {pipeline_mode = #tpu.pipeline_mode<synchronous>, transform_indices = @transform_5, window_bounds = array<i64: 8, 128>}, {pipeline_mode = #tpu.pipeline_mode<synchronous>, transform_indices = @transform_6, window_bounds = array<i64: 8, 1>}, {transform_indices = @transform_7, window_bounds = array<i64: 8, 8>}]} {
    %c0 = arith.constant 0 : index
    %c0_0 = arith.constant 0 : index
    %0 = vector.load %arg1[%c0, %c0_0] : memref<8x32xf32, #tpu.memory_space<vmem>>, vector<8x32xf32>
    %c0_1 = arith.constant 0 : index
    %c0_2 = arith.constant 0 : index
    %1 = vector.load %arg2[%c0_1, %c0_2] : memref<32x128xf32, #tpu.memory_space<vmem>>, vector<32x128xf32>
    %cst = arith.constant dense<0.000000e+00> : vector<8x128xf32>
    %2 = tpu.matmul %0, %1, %cst {dimension_numbers = #tpu.dot_dimension_numbers<[1], [0], [0], [1], [0, 0, 1, 1], [], []>} : vector<8x32xf32>, vector<32x128xf32>, vector<8x128xf32> -> vector<8x128xf32>
    %c0_3 = arith.constant 0 : index
    %c0_4 = arith.constant 0 : index
    %3 = vector.load %arg3[%c0_3, %c0_4] : memref<1x128xf32, #tpu.memory_space<vmem>>, vector<1x128xf32>
    %4 = vector.broadcast %3 : vector<1x128xf32> to vector<8x128xf32>
    %5 = arith.addf %2, %4 : vector<8x128xf32>
    %cst_5 = arith.constant 0.000000e+00 : f32
    %6 = vector.broadcast %cst_5 : f32 to vector<8x128xf32>
    %7 = arith.maximumf %5, %6 : vector<8x128xf32>
    %c0_6 = arith.constant 0 : index
    %c0_7 = arith.constant 0 : index
    %8 = vector.load %arg4[%c0_6, %c0_7] : memref<128x128xf32, #tpu.memory_space<vmem>>, vector<128x128xf32>
    %cst_8 = arith.constant dense<0.000000e+00> : vector<8x128xf32>
    %9 = tpu.matmul %7, %8, %cst_8 {dimension_numbers = #tpu.dot_dimension_numbers<[1], [0], [0], [1], [0, 0, 1, 1], [], []>} : vector<8x128xf32>, vector<128x128xf32>, vector<8x128xf32> -> vector<8x128xf32>
    %c0_9 = arith.constant 0 : index
    %c0_10 = arith.constant 0 : index
    %10 = vector.load %arg5[%c0_9, %c0_10] : memref<1x128xf32, #tpu.memory_space<vmem>>, vector<1x128xf32>
    %11 = vector.broadcast %10 : vector<1x128xf32> to vector<8x128xf32>
    %12 = arith.addf %9, %11 : vector<8x128xf32>
    %cst_11 = arith.constant 0.000000e+00 : f32
    %13 = vector.broadcast %cst_11 : f32 to vector<8x128xf32>
    %14 = arith.maximumf %12, %13 : vector<8x128xf32>
    %c0_12 = arith.constant 0 : index
    %c0_13 = arith.constant 0 : index
    %15 = vector.load %arg6[%c0_12, %c0_13] : memref<8x128xf32, #tpu.memory_space<vmem>>, vector<8x128xf32>
    %cst_14 = arith.constant dense<0.000000e+00> : vector<8x8xf32>
    %16 = tpu.matmul %15, %14, %cst_14 {dimension_numbers = #tpu.dot_dimension_numbers<[1], [1], [0], [0], [0, 0, 1, 0], [], []>} : vector<8x128xf32>, vector<8x128xf32>, vector<8x8xf32> -> vector<8x8xf32>
    %c0_15 = arith.constant 0 : index
    %c0_16 = arith.constant 0 : index
    %17 = vector.load %arg7[%c0_15, %c0_16] : memref<8x1xf32, #tpu.memory_space<vmem>>, vector<8x1xf32>
    %18 = vector.broadcast %17 : vector<8x1xf32> to vector<8x8xf32>
    %19 = arith.addf %16, %18 : vector<8x8xf32>
    %c0_17 = arith.constant 0 : index
    %c0_18 = arith.constant 0 : index
    %20 = vector.load %arg8[%c0_17, %c0_18] : memref<8x8xf32, #tpu.memory_space<vmem>>, vector<8x8xf32>
    tpu.vector_store %arg8[%c0_17, %c0_18], %19 {strides = array<i32>} : memref<8x8xf32, #tpu.memory_space<vmem>>, vector<8x8xf32>,
    return
  }
  func.func @transform_0(%arg0: i32) -> (i32, i32) {
    %c0_i32 = arith.constant 0 : i32
    %c0_i32_0 = arith.constant 0 : i32
    return %arg0, %c0_i32 : i32, i32
  }
  func.func @transform_1(%arg0: i32) -> (i32, i32) {
    %c0_i32 = arith.constant 0 : i32
    %c0_i32_0 = arith.constant 0 : i32
    %c0_i32_1 = arith.constant 0 : i32
    return %c0_i32, %c0_i32_0 : i32, i32
  }
  func.func @transform_2(%arg0: i32) -> (i32, i32) {
    %c0_i32 = arith.constant 0 : i32
    %c0_i32_0 = arith.constant 0 : i32
    %c0_i32_1 = arith.constant 0 : i32
    return %c0_i32, %c0_i32_0 : i32, i32
  }
  func.func @transform_3(%arg0: i32) -> (i32, i32) {
    %c0_i32 = arith.constant 0 : i32
    %c0_i32_0 = arith.constant 0 : i32
    %c0_i32_1 = arith.constant 0 : i32
    return %c0_i32, %c0_i32_0 : i32, i32
  }
  func.func @transform_4(%arg0: i32) -> (i32, i32) {
    %c0_i32 = arith.constant 0 : i32
    %c0_i32_0 = arith.constant 0 : i32
    %c0_i32_1 = arith.constant 0 : i32
    return %c0_i32, %c0_i32_0 : i32, i32
  }
  func.func @transform_5(%arg0: i32) -> (i32, i32) {
    %c0_i32 = arith.constant 0 : i32
    %c0_i32_0 = arith.constant 0 : i32
    %c0_i32_1 = arith.constant 0 : i32
    return %c0_i32, %c0_i32_0 : i32, i32
  }
  func.func @transform_6(%arg0: i32) -> (i32, i32) {
    %c0_i32 = arith.constant 0 : i32
    %c0_i32_0 = arith.constant 0 : i32
    %c0_i32_1 = arith.constant 0 : i32
    return %c0_i32, %c0_i32_0 : i32, i32
  }
  func.func @transform_7(%arg0: i32) -> (i32, i32) {
    %c0_i32 = arith.constant 0 : i32
    %c0_i32_0 = arith.constant 0 : i32
    return %c0_i32, %arg0 : i32, i32
  }
}

</mosaic_0001>

<llo_original>
// kernel: tpu_custom_call.1
$region0: #{tpu_custom_call.1}
  #allocation0 [shape = 'u32[]', space=smem, size = 0x4, offset = 0x4, fixed_abs, tag = 'smem constant byte address 0x4 - core index']
  #allocation1 [shape = 'u32[144,128]{1,0:T(1,128)}', space=vmem, size = 0x12000, scoped, tag = 'internal scratch']
  %s0 = inlined_call_operand.vmem [shape: f32[8,32], index: 0, kind: input, shape index: {}]
  %s1 = inlined_call_operand.hbm [shape: f32[32,128], index: 1, kind: input, shape index: {}]
  %s2 = inlined_call_operand.hbm [shape: f32[1,128], index: 2, kind: input, shape index: {}]
  %s3 = inlined_call_operand.hbm [shape: f32[128,128], index: 3, kind: input, shape index: {}]
  %s4 = inlined_call_operand.vmem [shape: f32[1,128], index: 4, kind: input, shape index: {}]
  %s5 = inlined_call_operand.vmem [shape: f32[8,128], index: 5, kind: input, shape index: {}]
  %s6 = inlined_call_operand.vmem [shape: f32[8,1], index: 6, kind: input, shape index: {}]
  %s7 = inlined_call_operand.hbm [shape: f32[8,8], index: 7, kind: output, shape index: {}]
  %s8 = sld [smem:[#allocation0]]
  $region50: #{tpu_custom_call.1} parent=0
    _
  %s10 = ssub.s32 1, %s8
  %s11 = scalar_select 0, %s10, %s8
  $region1: #{tpu_custom_call.1} parent=0
    #allocation2 [shape = 'u8[16384]{0}', space=vmem, size = 0x4000, scoped, tag = 'input window, operand 1, single buffered']
    #allocation3 [shape = 's32[1]{0}', space=sflag, size = 0x4, scoped, tag = 'scoped memory for tpu_custom_call.1']
    #allocation4 [shape = 's32[1]{0}', space=sflag, size = 0x4, scoped, tag = 'scoped memory for tpu_custom_call.1']
    #allocation5 [shape = 'u8[512]{0}', space=vmem, size = 0x400, scoped, tag = 'input window, operand 2, single buffered']
    #allocation6 [shape = 's32[1]{0}', space=sflag, size = 0x4, scoped, tag = 'scoped memory for tpu_custom_call.1']
    #allocation7 [shape = 'u8[65536]{0}', space=vmem, size = 0x10000, scoped, tag = 'input window, operand 3, single buffered']
    #allocation8 [shape = 'u8[4096]{0}', space=vmem, size = 0x1000, scoped, tag = 'output window, operand 0, single buffered']
    %12 = vsyncpa [#allocation3], 0
    %13 = vsyncpa [#allocation6], 0
    %14 = vsyncpa [#allocation4], 0
    // Predicated region
    $region2: #{tpu_custom_call.1} parent=1 // pred_check
      _
    $region3: #{tpu_custom_call.1} parent=1 // pred_check_branch
      %16 = sbr.rel (0) target = $region5
    $region4: #{tpu_custom_call.1} parent=1 // pred_region
      _
    $region5: #{tpu_custom_call.1} parent=1 // pred_fallthru
      _
    // Predicated region
    $region6: #{tpu_custom_call.1} parent=1 // pred_check
      _
    $region7: #{tpu_custom_call.1} parent=1 // pred_check_branch
      %18 = sbr.rel (0) target = $region9
    $region8: #{tpu_custom_call.1} parent=1 // pred_region
      %s20 = ssub.s32 512, 512
      %21 = vsyncadd [#allocation3], %s20
      %s22 = sshll.u32 [#allocation2], 4
      %s23 = int_to_ptr.vmem [resolvable:$true] %s22
      %28 = dma.hbm_to_vmem [thread:$0]  %s1, 512, %s23, [#allocation3], 128, 128, 8
    $region9: #{tpu_custom_call.1} parent=1 // pred_fallthru
      _
    // Predicated region
    $region10: #{tpu_custom_call.1} parent=1 // pred_check
      _
    $region11: #{tpu_custom_call.1} parent=1 // pred_check_branch
      %30 = sbr.rel (0) target = $region13
    $region12: #{tpu_custom_call.1} parent=1 // pred_region
      %s32 = ssub.s32 16, 16
      %33 = vsyncadd [#allocation6], %s32
      %s35 = sshll.u32 [#allocation5], 4
      %s36 = int_to_ptr.vmem [resolvable:$true] %s35
      %38 = dma.hbm_to_vmem [thread:$0]  %s2, 16, %s36, [#allocation6]
    $region13: #{tpu_custom_call.1} parent=1 // pred_fallthru
      _
    // Predicated region
    $region14: #{tpu_custom_call.1} parent=1 // pred_check
      _
    $region15: #{tpu_custom_call.1} parent=1 // pred_check_branch
      %40 = sbr.rel (0) target = $region17
    $region16: #{tpu_custom_call.1} parent=1 // pred_region
      %s42 = ssub.s32 2048, 2048
      %43 = vsyncadd [#allocation6], %s42
      %s44 = sshll.u32 [#allocation7], 4
      %s45 = int_to_ptr.vmem [resolvable:$true] %s44
      %50 = dma.hbm_to_vmem [thread:$0]  %s3, 2048, %s45, [#allocation6], 128, 128, 8
    $region17: #{tpu_custom_call.1} parent=1 // pred_fallthru
      _
    // Predicated region
    $region18: #{tpu_custom_call.1} parent=1 // pred_check
      _
    $region19: #{tpu_custom_call.1} parent=1 // pred_check_branch
      %52 = sbr.rel (0) target = $region21
    $region20: #{tpu_custom_call.1} parent=1 // pred_region
      _
    $region21: #{tpu_custom_call.1} parent=1 // pred_fallthru
      _
    // Predicated region
    $region22: #{tpu_custom_call.1} parent=1 // pred_check
      _
    $region23: #{tpu_custom_call.1} parent=1 // pred_check_branch
      %54 = sbr.rel (0) target = $region25
    $region24: #{tpu_custom_call.1} parent=1 // pred_region
      _
    $region25: #{tpu_custom_call.1} parent=1 // pred_fallthru
      _
    // Predicated region
    $region26: #{tpu_custom_call.1} parent=1 // pred_check
      _
    $region27: #{tpu_custom_call.1} parent=1 // pred_check_branch
      %56 = sbr.rel (0) target = $region29
    $region28: #{tpu_custom_call.1} parent=1 // pred_region
      _
    $region29: #{tpu_custom_call.1} parent=1 // pred_fallthru
      _
    // Predicated region
    $region30: #{tpu_custom_call.1} parent=1 // pred_check
      _
    $region31: #{tpu_custom_call.1} parent=1 // pred_check_branch
      %58 = sbr.rel (0) target = $region33
    $region32: #{tpu_custom_call.1} parent=1 // pred_region
      %59 = dma.done [#allocation3], 512
    $region33: #{tpu_custom_call.1} parent=1 // pred_fallthru
      _
    // Predicated region
    $region34: #{tpu_custom_call.1} parent=1 // pred_check
      _
    $region35: #{tpu_custom_call.1} parent=1 // pred_check_branch
      %61 = sbr.rel (0) target = $region37
    $region36: #{tpu_custom_call.1} parent=1 // pred_region
      %62 = dma.done [#allocation6], 16
    $region37: #{tpu_custom_call.1} parent=1 // pred_fallthru
      _
    // Predicated region
    $region38: #{tpu_custom_call.1} parent=1 // pred_check
      _
    $region39: #{tpu_custom_call.1} parent=1 // pred_check_branch
      %64 = sbr.rel (0) target = $region41
    $region40: #{tpu_custom_call.1} parent=1 // pred_region
      %65 = dma.done [#allocation6], 2048
    $region41: #{tpu_custom_call.1} parent=1 // pred_fallthru
      _
    %v66 = vld [vmem:[%s0] sm:$0xff]
    %v67 = vld [vmem:[#allocation2] sm:$0xff]
    %v68 = vld [vmem:[#allocation2 + $0x8] sm:$0xff]
    %v69 = vld [vmem:[#allocation2 + $0x10] sm:$0xff]
    %v70 = vld [vmem:[#allocation2 + $0x18] sm:$0xff]
    %v71 = vld [vmem:[#allocation5] sm:$0x1]
    %v73 = vlaneseq
    %v74 = vshrl.u32 %v73, 7
    %v75 = vsub.s32 0, %v74
    %v76 = vrot.slane %v71, %v75
    %vm78 = vcmask 261120
    %v80 = vsel %vm78, %v66, 0
    %82 = vmatprep.subr.mxu0 0.0
    %83 = vmatpush1.msra.mxu0 %v67
    %84 = vmatprep.subr.mxu0 0.0
    %85 = vmatpush1.msra.mxu0 %v68
    %86 = vmatprep.subr.mxu0 0.0
    %87 = vmatpush1.msra.mxu0 %v69
    %88 = vmatprep.subr.mxu0 0.0
    %89 = vmatpush1.msra.mxu0 %v70
    %90 = vmatprep.subr.mxu0 0.0
    %91 = vmatpush1.msra.mxu0 0.0
    %92 = vmatprep.subr.mxu0 0.0
    %93 = vmatpush1.msra.mxu0 0.0
    %94 = vmatprep.subr.mxu0 0.0
    %95 = vmatpush1.msra.mxu0 0.0
    %96 = vmatprep.subr.mxu0 0.0
    %97 = vmatpush1.msra.mxu0 0.0
    %98 = vmatprep.subr.mxu0 0.0
    %99 = vmatpush1.msra.mxu0 0.0
    %100 = vmatprep.subr.mxu0 0.0
    %101 = vmatpush1.msra.mxu0 0.0
    %102 = vmatprep.subr.mxu0 0.0
    %103 = vmatpush1.msra.mxu0 0.0
    %104 = vmatprep.subr.mxu0 0.0
    %105 = vmatpush1.msra.mxu0 0.0
    %106 = vmatprep.subr.mxu0 0.0
    %107 = vmatpush1.msra.mxu0 0.0
    %108 = vmatprep.subr.mxu0 0.0
    %109 = vmatpush1.msra.mxu0 0.0
    %110 = vmatprep.subr.mxu0 0.0
    %111 = vmatpush1.msra.mxu0 0.0
    %112 = vmatprep.subr.mxu0 0.0
    %113 = vmatpush1.msra.mxu0 0.0
    %114 = vmatprep.subr.mxu0 0.0
    %115 = vmatpush1.msra.mxu0 0.0
    %116 = vmatprep.subr.mxu0 0.0
    %117 = vmatpush1.msra.mxu0 0.0
    %118 = vmatprep.subr.mxu0 0.0
    %119 = vmatpush1.msra.mxu0 0.0
    %120 = vmatprep.subr.mxu0 0.0
    %121 = vmatpush1.msra.mxu0 0.0
    %122 = vmatprep.subr.mxu0 0.0
    %123 = vmatpush1.msra.mxu0 0.0
    %124 = vmatprep.subr.mxu0 0.0
    %125 = vmatpush1.msra.mxu0 0.0
    %126 = vmatprep.subr.mxu0 0.0
    %127 = vmatpush1.msra.mxu0 0.0
    %128 = vmatprep.subr.mxu0 0.0
    %129 = vmatpush1.msra.mxu0 0.0
    %130 = vmatprep.subr.mxu0 0.0
    %131 = vmatpush1.msra.mxu0 0.0
    %132 = vmatprep.subr.mxu0 0.0
    %133 = vmatpush1.msra.mxu0 0.0
    %134 = vmatprep.subr.mxu0 0.0
    %135 = vmatpush1.msra.mxu0 0.0
    %136 = vmatprep.subr.mxu0 0.0
    %137 = vmatpush1.msra.mxu0 0.0
    %138 = vmatprep.subr.mxu0 0.0
    %139 = vmatpush1.msra.mxu0 0.0
    %140 = vmatprep.subr.mxu0 0.0
    %141 = vmatpush1.msra.mxu0 0.0
    %142 = vmatprep.subr.mxu0 0.0
    %143 = vmatpush1.msra.mxu0 0.0
    %144 = vmatprep.subr.mxu0 0.0
    %145 = vmatpush1.msra.mxu0 0.0
    %146 = vmatprep.mubr.f32.mxu0 0.0
    %147 = vmatmul.mubr.f32.gmra.mrb[0].mxu0 %v80
    %v148 = vpop.f32.mrb[0].mxu0
    %v149 = vadd.f32 %v76, %v148
    %v150 = vpop.f32.mrb[0].mxu0
    %151 = vdwg.mxu0
    %v152 = vmax.f32 %v149, 0.0
    %v153 = vld [vmem:[#allocation7] sm:$0xff]
    %v154 = vld [vmem:[#allocation7 + $0x8] sm:$0xff]
    %v155 = vld [vmem:[#allocation7 + $0x10] sm:$0xff]
    %v156 = vld [vmem:[#allocation7 + $0x18] sm:$0xff]
    %v157 = vld [vmem:[#allocation7 + $0x20] sm:$0xff]
    %v158 = vld [vmem:[#allocation7 + $0x28] sm:$0xff]
    %v159 = vld [vmem:[#allocation7 + $0x30] sm:$0xff]
    %v160 = vld [vmem:[#allocation7 + $0x38] sm:$0xff]
    %v161 = vld [vmem:[#allocation7 + $0x40] sm:$0xff]
    %v162 = vld [vmem:[#allocation7 + $0x48] sm:$0xff]
    %v163 = vld [vmem:[#allocation7 + $0x50] sm:$0xff]
    %v164 = vld [vmem:[#allocation7 + $0x58] sm:$0xff]
    %v165 = vld [vmem:[#allocation7 + $0x60] sm:$0xff]
    %v166 = vld [vmem:[#allocation7 + $0x68] sm:$0xff]
    %v167 = vld [vmem:[#allocation7 + $0x70] sm:$0xff]
    %v168 = vld [vmem:[#allocation7 + $0x78] sm:$0xff]
    %v169 = vld [vmem:[%s4] sm:$0x1]
    %v171 = vlaneseq
    %v172 = vshrl.u32 %v171, 7
    %v173 = vsub.s32 0, %v172
    %v174 = vrot.slane %v169, %v173
    %176 = vmatprep.subr.mxu0 0.0
    %177 = vmatpush1.msra.mxu0 %v153
    %178 = vmatprep.subr.mxu0 0.0
    %179 = vmatpush1.msra.mxu0 %v154
    %180 = vmatprep.subr.mxu0 0.0
    %181 = vmatpush1.msra.mxu0 %v155
    %182 = vmatprep.subr.mxu0 0.0
    %183 = vmatpush1.msra.mxu0 %v156
    %184 = vmatprep.subr.mxu0 0.0
    %185 = vmatpush1.msra.mxu0 %v157
    %186 = vmatprep.subr.mxu0 0.0
    %187 = vmatpush1.msra.mxu0 %v158
    %188 = vmatprep.subr.mxu0 0.0
    %189 = vmatpush1.msra.mxu0 %v159
    %190 = vmatprep.subr.mxu0 0.0
    %191 = vmatpush1.msra.mxu0 %v160
    %192 = vmatprep.subr.mxu0 0.0
    %193 = vmatpush1.msra.mxu0 %v161
    %194 = vmatprep.subr.mxu0 0.0
    %195 = vmatpush1.msra.mxu0 %v162
    %196 = vmatprep.subr.mxu0 0.0
    %197 = vmatpush1.msra.mxu0 %v163
    %198 = vmatprep.subr.mxu0 0.0
    %199 = vmatpush1.msra.mxu0 %v164
    %200 = vmatprep.subr.mxu0 0.0
    %201 = vmatpush1.msra.mxu0 %v165
    %202 = vmatprep.subr.mxu0 0.0
    %203 = vmatpush1.msra.mxu0 %v166
    %204 = vmatprep.subr.mxu0 0.0
    %205 = vmatpush1.msra.mxu0 %v167
    %206 = vmatprep.subr.mxu0 0.0
    %207 = vmatpush1.msra.mxu0 %v168
    %208 = vmatprep.subr.mxu0 0.0
    %209 = vmatpush1.msra.mxu0 0.0
    %210 = vmatprep.subr.mxu0 0.0
    %211 = vmatpush1.msra.mxu0 0.0
    %212 = vmatprep.subr.mxu0 0.0
    %213 = vmatpush1.msra.mxu0 0.0
    %214 = vmatprep.subr.mxu0 0.0
    %215 = vmatpush1.msra.mxu0 0.0
    %216 = vmatprep.subr.mxu0 0.0
    %217 = vmatpush1.msra.mxu0 0.0
    %218 = vmatprep.subr.mxu0 0.0
    %219 = vmatpush1.msra.mxu0 0.0
    %220 = vmatprep.subr.mxu0 0.0
    %221 = vmatpush1.msra.mxu0 0.0
    %222 = vmatprep.subr.mxu0 0.0
    %223 = vmatpush1.msra.mxu0 0.0
    %224 = vmatprep.subr.mxu0 0.0
    %225 = vmatpush1.msra.mxu0 0.0
    %226 = vmatprep.subr.mxu0 0.0
    %227 = vmatpush1.msra.mxu0 0.0
    %228 = vmatprep.subr.mxu0 0.0
    %229 = vmatpush1.msra.mxu0 0.0
    %230 = vmatprep.subr.mxu0 0.0
    %231 = vmatpush1.msra.mxu0 0.0
    %232 = vmatprep.subr.mxu0 0.0
    %233 = vmatpush1.msra.mxu0 0.0
    %234 = vmatprep.subr.mxu0 0.0
    %235 = vmatpush1.msra.mxu0 0.0
    %236 = vmatprep.subr.mxu0 0.0
    %237 = vmatpush1.msra.mxu0 0.0
    %238 = vmatprep.subr.mxu0 0.0
    %239 = vmatpush1.msra.mxu0 0.0
    %240 = vmatprep.mubr.f32.mxu0 0.0
    %241 = vmatmul.mubr.f32.gmra.mrb[0].mxu0 %v152
    %v242 = vpop.f32.mrb[0].mxu0
    %v243 = vadd.f32 %v174, %v242
    %v244 = vpop.f32.mrb[0].mxu0
    %245 = vdwg.mxu0
    %v246 = vmax.f32 %v243, 0.0
    %v247 = vld [vmem:[%s5] sm:$0xff]
    %v248 = vld [vmem:[%s6] sm:$0xff]
    %250 = vset.pattern.permute.xlu0 0
    %251 = vperm.xlu0 %250, %v248
    %v252 = vpop.permute.xlu0 %251
    %254 = vmatprep.subr.mxu0 0.0
    %255 = vmatpush1.xpose.msra.mxu0 %v246
    %256 = vmatprep.subr.mxu0 0.0
    %257 = vmatpush1.xpose.msra.mxu0 0.0
    %258 = vmatprep.subr.mxu0 0.0
    %259 = vmatpush1.xpose.msra.mxu0 0.0
    %260 = vmatprep.subr.mxu0 0.0
    %261 = vmatpush1.xpose.msra.mxu0 0.0
    %262 = vmatprep.subr.mxu0 0.0
    %263 = vmatpush1.xpose.msra.mxu0 0.0
    %264 = vmatprep.subr.mxu0 0.0
    %265 = vmatpush1.xpose.msra.mxu0 0.0
    %266 = vmatprep.subr.mxu0 0.0
    %267 = vmatpush1.xpose.msra.mxu0 0.0
    %268 = vmatprep.subr.mxu0 0.0
    %269 = vmatpush1.xpose.msra.mxu0 0.0
    %270 = vmatprep.subr.mxu0 0.0
    %271 = vmatpush1.xpose.msra.mxu0 0.0
    %272 = vmatprep.subr.mxu0 0.0
    %273 = vmatpush1.xpose.msra.mxu0 0.0
    %274 = vmatprep.subr.mxu0 0.0
    %275 = vmatpush1.xpose.msra.mxu0 0.0
    %276 = vmatprep.subr.mxu0 0.0
    %277 = vmatpush1.xpose.msra.mxu0 0.0
    %278 = vmatprep.subr.mxu0 0.0
    %279 = vmatpush1.xpose.msra.mxu0 0.0
    %280 = vmatprep.subr.mxu0 0.0
    %281 = vmatpush1.xpose.msra.mxu0 0.0
    %282 = vmatprep.subr.mxu0 0.0
    %283 = vmatpush1.xpose.msra.mxu0 0.0
    %284 = vmatprep.subr.mxu0 0.0
    %285 = vmatpush1.xpose.msra.mxu0 0.0
    %286 = vmatprep.subr.mxu0 0.0
    %287 = vmatpush1.xpose.msra.mxu0 0.0
    %288 = vmatprep.subr.mxu0 0.0
    %289 = vmatpush1.xpose.msra.mxu0 0.0
    %290 = vmatprep.subr.mxu0 0.0
    %291 = vmatpush1.xpose.msra.mxu0 0.0
    %292 = vmatprep.subr.mxu0 0.0
    %293 = vmatpush1.xpose.msra.mxu0 0.0
    %294 = vmatprep.subr.mxu0 0.0
    %295 = vmatpush1.xpose.msra.mxu0 0.0
    %296 = vmatprep.subr.mxu0 0.0
    %297 = vmatpush1.xpose.msra.mxu0 0.0
    %298 = vmatprep.subr.mxu0 0.0
    %299 = vmatpush1.xpose.msra.mxu0 0.0
    %300 = vmatprep.subr.mxu0 0.0
    %301 = vmatpush1.xpose.msra.mxu0 0.0
    %302 = vmatprep.subr.mxu0 0.0
    %303 = vmatpush1.xpose.msra.mxu0 0.0
    %304 = vmatprep.subr.mxu0 0.0
    %305 = vmatpush1.xpose.msra.mxu0 0.0
    %306 = vmatprep.subr.mxu0 0.0
    %307 = vmatpush1.xpose.msra.mxu0 0.0
    %308 = vmatprep.subr.mxu0 0.0
    %309 = vmatpush1.xpose.msra.mxu0 0.0
    %310 = vmatprep.subr.mxu0 0.0
    %311 = vmatpush1.xpose.msra.mxu0 0.0
    %312 = vmatprep.subr.mxu0 0.0
    %313 = vmatpush1.xpose.msra.mxu0 0.0
    %314 = vmatprep.subr.mxu0 0.0
    %315 = vmatpush1.xpose.msra.mxu0 0.0
    %316 = vmatprep.subr.mxu0 0.0
    %317 = vmatpush1.xpose.msra.mxu0 0.0
    %318 = vmatprep.mubr.f32.mxu0 0.0
    %319 = vmatmul.mubr.f32.gmra.mrb[0].mxu0 %v247
    %v320 = vpop.f32.mrb[0].mxu0
    %v321 = vadd.f32 %v252, %v320
    %v322 = vpop.f32.mrb[0].mxu0
    %323 = vdwg.mxu0
    %vm324 = vcmask 64512
    %325 = vst.msk [vmem:[#allocation8] sm:$0xff] %vm324, %v321
    // Predicated region
    $region42: #{tpu_custom_call.1} parent=1 // pred_check
      _
    $region43: #{tpu_custom_call.1} parent=1 // pred_check_branch
      %327 = sbr.rel (0) target = $region45
    $region44: #{tpu_custom_call.1} parent=1 // pred_region
      %s329 = ssub.s32 128, 128
      %330 = vsyncadd [#allocation4], %s329
      %s332 = sshll.u32 [#allocation8], 4
      %s333 = int_to_ptr.vmem [resolvable:$true] %s332
      %335 = dma.vmem_to_hbm [thread:$0]  %s333, 128, %s7, [#allocation4]
    $region45: #{tpu_custom_call.1} parent=1 // pred_fallthru
      _
    // Predicated region
    $region46: #{tpu_custom_call.1} parent=1 // pred_check
      _
    $region47: #{tpu_custom_call.1} parent=1 // pred_check_branch
      %337 = sbr.rel (0) target = $region49
    $region48: #{tpu_custom_call.1} parent=1 // pred_region
      %338 = dma.done [#allocation4], 128
    $region49: #{tpu_custom_call.1} parent=1 // pred_fallthru
      _
    %339 = vsyncpa [#allocation3], 1
    %340 = vsyncpa [#allocation6], 1
    %341 = vsyncpa [#allocation4], 1

</llo_original>
